<compile_context>
chip_gen: v5e
topology: v5e:2x2
jax: 0.10.0
libtpu: 0.0.40
codegen_flags: <defaults>
</compile_context>

<pallas_src>
import functools

import jax
import jax.numpy as jnp
from jax.experimental import pallas as pl
from jax.experimental.pallas import tpu as pltpu


# ----------------------------------------------------------------------------
# In-kernel helpers (operate on a 2D (H, W) f32 value)
# ----------------------------------------------------------------------------
def _nbr_im1(x):  # r[i, j] = x[i-1, j], replicate row 0
    return jnp.concatenate([x[:1, :], x[:-1, :]], axis=0)


def _nbr_ip1(x):  # r[i, j] = x[i+1, j], replicate last row
    return jnp.concatenate([x[1:, :], x[-1:, :]], axis=0)


def _nbr_jm1(x):  # r[i, j] = x[i, j-1], replicate col 0
    return jnp.concatenate([x[:, :1], x[:, :-1]], axis=1)


def _nbr_jp1(x):  # r[i, j] = x[i, j+1], replicate last col
    return jnp.concatenate([x[:, 1:], x[:, -1:]], axis=1)


def _sobel_edge(m):
    """Per-pixel indicator that the 3x3 Sobel response (replicate pad) != 0.

    gx = [[-1,0,1],[-2,0,2],[-1,0,1]], gy = [[-1,-2,-1],[0,0,0],[1,2,1]],
    computed separably; all values are multiples of 0.25 -> exact in f32.
    """
    v = _nbr_im1(m) + 2.0 * m + _nbr_ip1(m)      # vertical [1,2,1] smooth
    gx = _nbr_jp1(v) - _nbr_jm1(v)               # horizontal [-1,0,1]
    h = _nbr_jm1(m) + 2.0 * m + _nbr_jp1(m)      # horizontal [1,2,1] smooth
    gy = _nbr_ip1(h) - _nbr_im1(h)               # vertical [-1,0,1]
    return jnp.logical_or(gx != 0.0, gy != 0.0).astype(jnp.float32)


def _awbce_sum(yh, y, beta):
    """sum over elements of -(1-beta)*logsig(yh)*y - beta*logsig(-yh)*(1-y)."""
    log1pexp = jnp.log1p(jnp.exp(-jnp.abs(yh)))      # stable softplus(-|x|)
    logit1 = jnp.minimum(yh, 0.0) - log1pexp         # logsigmoid(yh)
    logit0 = logit1 - yh                             # logsigmoid(-yh)
    loss = -(1.0 - beta) * logit1 * y - beta * logit0 * (1.0 - y)
    return jnp.sum(loss)


# ----------------------------------------------------------------------------
# Fused per-level kernel: Sobel target construction + auto-weight BCE,
# tiled over batch, loss sum accumulated across the ("arbitrary") grid axis.
# ----------------------------------------------------------------------------
def _hed_level_kernel(n_preds, inv_count, mask_ref, *refs):
    pred_refs = refs[:n_preds]
    out_ref = refs[n_preds]          # (1, 1) SMEM scalar output
    acc_ref = refs[n_preds + 1]      # (1,) SMEM running sum (persists per grid)

    @pl.when(pl.program_id(0) == 0)
    def _init():
        acc_ref[0] = jnp.float32(0.0)

    m = mask_ref[...].astype(jnp.float32)            # (H, W) mask channel
    edge = _sobel_edge(m)                            # (H, W) edge channel
    inv_hw = 1.0 / float(m.shape[0] * m.shape[1])
    beta_m = jnp.sum(m) * inv_hw                     # per-(n, c=0) beta
    beta_e = jnp.sum(edge) * inv_hw                  # per-(n, c=1) beta

    block_sum = jnp.float32(0.0)
    for pref in pred_refs:                           # unrolled (n_preds <= 2)
        yh_m = pref[0].astype(jnp.float32)           # logits vs mask channel
        yh_e = pref[1].astype(jnp.float32)           # logits vs edge channel
        block_sum = block_sum + _awbce_sum(yh_m, m, beta_m)
        block_sum = block_sum + _awbce_sum(yh_e, edge, beta_e)

    acc_ref[0] = acc_ref[0] + block_sum

    @pl.when(pl.program_id(0) == pl.num_programs(0) - 1)
    def _finalize():
        out_ref[0, 0] = acc_ref[0] * inv_count


def _hed_level_loss(mask_nchw, preds):
    """Sum of auto_weight_bce(p, cat([mask, sobel(mask)], 1)) over p in preds.

    mask_nchw: (N, 1, H, W); preds: list of (N, 2, H, W) logits sharing this
    level's target.  All preds have the same element count, so their means are
    combined as one sum divided once by N*2*H*W.
    """
    n, c, h, w = mask_nchw.shape
    assert c == 1
    n_preds = len(preds)
    for p in preds:
        assert p.shape == (n, 2, h, w), p.shape

    elems_per_pred = n * 2 * h * w
    inv_count = 1.0 / float(elems_per_pred)
    kernel = functools.partial(_hed_level_kernel, n_preds, inv_count)

    # Per grid step: one batch element; full (H, W) so beta stays a local
    # spatial reduce and no partial-tile masking is needed.
    # TODO(synk): very large H*W with tiny N would additionally need spatial
    # tiling with a halo row/col exchange for the Sobel stencil.
    in_specs = [pl.BlockSpec((None, None, h, w), lambda i: (i, 0, 0, 0))]
    in_specs += [pl.BlockSpec((None, 2, h, w), lambda i: (i, 0, 0, 0))
                 for _ in range(n_preds)]

    plane_bytes = h * w * 4
    block_bytes = plane_bytes * (1 + 2 * n_preds)
    # double-buffered inputs + slack, capped below v7x usable VMEM.
    vmem_limit = int(min(max(4 * block_bytes + (4 << 20), 16 << 20), 64 << 20))

    cost = pl.CostEstimate(
        flops=int(40 * n * h * w * (1 + 2 * n_preds)),
        transcendentals=int(2 * n_preds * elems_per_pred),
        bytes_accessed=int(4 * n * h * w * (1 + 2 * n_preds)),
    )

    out = pl.pallas_call(
        kernel,
        out_shape=jax.ShapeDtypeStruct((1, 1), jnp.float32),
        grid=(n,),
        in_specs=in_specs,
        out_specs=pl.BlockSpec(memory_space=pltpu.MemorySpace.SMEM),
        scratch_shapes=[pltpu.SMEM((1,), jnp.float32)],
        compiler_params=pltpu.CompilerParams(
            dimension_semantics=("arbitrary",),   # reduction axis
            vmem_limit_bytes=vmem_limit),
        cost_estimate=cost,
    )(mask_nchw, *preds)
    return out[0, 0]


# ----------------------------------------------------------------------------
# Pyramid construction + HedUnetLoss forward
# ----------------------------------------------------------------------------
def avg_pool2(x):
    n, c, h, w = x.shape
    return x.reshape(n, c, h // 2, 2, w // 2, 2).mean(axis=(3, 5))


def hed_unet_loss(y_hat, y_hat_levels, target, stack_height=1):
    # Mask pyramid (cheap single-channel glue in plain JAX).
    masks = [target]
    for _ in range(stack_height):
        masks.append(avg_pool2(masks[-1]))

    # Which prediction tensors consume each level's target.  Level 0 gets both
    # the final head (loss_final) and the first deep-supervision head, fused
    # into one kernel invocation.
    level_preds = [[] for _ in masks]
    for lvl, p in enumerate(y_hat_levels[:len(masks)]):
        level_preds[lvl].append(p)
    level_preds[0].append(y_hat)

    total = 0.0
    for m, preds in zip(masks, level_preds):
        if preds:
            total = total + _hed_level_loss(m, preds)
    return total


# ----------------------------------------------------------------------------
# Pure-JAX reference (for correctness check only)
# ----------------------------------------------------------------------------
def _ref_awbce(yh, y):
    beta = jnp.mean(y, axis=(2, 3), keepdims=True)
    l1 = jax.nn.log_sigmoid(yh)
    l0 = jax.nn.log_sigmoid(-yh)
    return jnp.mean(-(1.0 - beta) * l1 * y - beta * l0 * (1.0 - y))


def _ref_sobel(mask):
    w = jnp.array([[[-1, 0, 1], [-2, 0, 2], [-1, 0, 1]],
                   [[-1, -2, -1], [0, 0, 0], [1, 2, 1]]],
                  jnp.float32).reshape(2, 1, 3, 3)
    xp = jnp.pad(mask, ((0, 0), (0, 0), (1, 1), (1, 1)), mode="edge")
    conv = jax.lax.conv_general_dilated(
        xp, w, (1, 1), "VALID", dimension_numbers=("NCHW", "OIHW", "NCHW"))
    return jnp.any(conv != 0, axis=1, keepdims=True).astype(jnp.float32)


def _ref_loss(y_hat, y_hat_levels, target):
    masks = [target, avg_pool2(target)]
    targets = [jnp.concatenate([m, _ref_sobel(m)], axis=1) for m in masks]
    loss_levels = [_ref_awbce(p, t) for p, t in zip(y_hat_levels, targets)]
    return _ref_awbce(y_hat, targets[0]) + sum(loss_levels)


if __name__ == "__main__":
    key = jax.random.PRNGKey(0)
    k1, k2, k3, k4 = jax.random.split(key, 4)
    N, H, W = 2, 16, 16

    # target: single-channel binary mask (Sobel stencil expects 1 channel)
    target = (jax.random.uniform(k1, (N, 1, H, W)) > 0.5).astype(jnp.float32)
    # predictions: 2 channels (mask + edge), deep supervision at 2 scales
    y_hat = jax.random.normal(k2, (N, 2, H, W), dtype=jnp.float32)
    y_hat_levels = [
        jax.random.normal(k3, (N, 2, H, W), dtype=jnp.float32),
        jax.random.normal(k4, (N, 2, H // 2, W // 2), dtype=jnp.float32),
    ]

    loss = hed_unet_loss(y_hat, y_hat_levels, target)
    jax.block_until_ready(loss)

    ref = _ref_loss(y_hat, y_hat_levels, target)
    assert jnp.allclose(loss, ref, rtol=1e-5, atol=1e-5), (loss, ref)

    print("KERNEL_OK")
</pallas_src>

<mosaic_0001>
module attributes {stable_mosaic.version = 11 : i64} {
  func.func @_hed_level_kernel(%arg0: i32, %arg1: memref<1x1x16x16xf32, #tpu.memory_space<vmem>>, %arg2: memref<1x2x16x16xf32, #tpu.memory_space<vmem>>, %arg3: memref<1x2x16x16xf32, #tpu.memory_space<vmem>>, %arg4: memref<1x1xf32, #tpu.memory_space<smem>>, %arg5: memref<1xf32, #tpu.memory_space<smem>>) attributes {dimension_semantics = [#tpu.dimension_semantics<arbitrary>], iteration_bounds = array<i64: 2>, scalar_prefetch = 0 : i64, scratch_operands = 1 : i64, tpu.core_type = #tpu.core_type<tc>, window_params = [{transform_indices = @transform_0, window_bounds = array<i64: 1, 1, 16, 16>}, {transform_indices = @transform_1, window_bounds = array<i64: 1, 2, 16, 16>}, {transform_indices = @transform_2, window_bounds = array<i64: 1, 2, 16, 16>}, {transform_indices = @transform_3, window_bounds = array<i64: 1, 1>}]} {
    %c0_i32 = arith.constant 0 : i32
    %0 = arith.cmpi eq, %arg0, %c0_i32 : i32
    %1 = arith.extui %0 : i1 to i32
    %c0_i32_0 = arith.constant 0 : i32
    %2 = arith.cmpi ne, %1, %c0_i32_0 : i32
    scf.if %2 {
      %cst_54 = arith.constant 0.000000e+00 : f32
      %c0_55 = arith.constant 0 : index
      %170 = memref.load %arg5[%c0_55] : memref<1xf32, #tpu.memory_space<smem>>
      memref.store %cst_54, %arg5[%c0_55] : memref<1xf32, #tpu.memory_space<smem>>
    } else {
    }
    %c0 = arith.constant 0 : index
    %c0_1 = arith.constant 0 : index
    %c0_2 = arith.constant 0 : index
    %c0_3 = arith.constant 0 : index
    %3 = vector.load %arg1[%c0, %c0_1, %c0_2, %c0_3] : memref<1x1x16x16xf32, #tpu.memory_space<vmem>>, vector<1x1x16x16xf32>
    %4 = vector.shape_cast %3 : vector<1x1x16x16xf32> to vector<16x16xf32>
    %5 = vector.extract_strided_slice %4 {offsets = [0, 0], sizes = [1, 16], strides = [1, 1]} : vector<16x16xf32> to vector<1x16xf32>
    %6 = vector.extract_strided_slice %4 {offsets = [0, 0], sizes = [15, 16], strides = [1, 1]} : vector<16x16xf32> to vector<15x16xf32>
    %7 = tpu.concatenate %5, %6 in 0 : vector<1x16xf32>, vector<15x16xf32> -> vector<16x16xf32>
    %cst = arith.constant 2.000000e+00 : f32
    %8 = vector.broadcast %cst : f32 to vector<16x16xf32>
    %9 = arith.mulf %8, %4 : vector<16x16xf32>
    %10 = arith.addf %7, %9 : vector<16x16xf32>
    %11 = vector.extract_strided_slice %4 {offsets = [1, 0], sizes = [15, 16], strides = [1, 1]} : vector<16x16xf32> to vector<15x16xf32>
    %12 = vector.extract_strided_slice %4 {offsets = [15, 0], sizes = [1, 16], strides = [1, 1]} : vector<16x16xf32> to vector<1x16xf32>
    %13 = tpu.concatenate %11, %12 in 0 : vector<15x16xf32>, vector<1x16xf32> -> vector<16x16xf32>
    %14 = arith.addf %10, %13 : vector<16x16xf32>
    %15 = vector.extract_strided_slice %14 {offsets = [0, 1], sizes = [16, 15], strides = [1, 1]} : vector<16x16xf32> to vector<16x15xf32>
    %16 = vector.extract_strided_slice %14 {offsets = [0, 15], sizes = [16, 1], strides = [1, 1]} : vector<16x16xf32> to vector<16x1xf32>
    %17 = tpu.concatenate %15, %16 in 1 : vector<16x15xf32>, vector<16x1xf32> -> vector<16x16xf32>
    %18 = vector.extract_strided_slice %14 {offsets = [0, 0], sizes = [16, 1], strides = [1, 1]} : vector<16x16xf32> to vector<16x1xf32>
    %19 = vector.extract_strided_slice %14 {offsets = [0, 0], sizes = [16, 15], strides = [1, 1]} : vector<16x16xf32> to vector<16x15xf32>
    %20 = tpu.concatenate %18, %19 in 1 : vector<16x1xf32>, vector<16x15xf32> -> vector<16x16xf32>
    %21 = arith.subf %17, %20 : vector<16x16xf32>
    %22 = vector.extract_strided_slice %4 {offsets = [0, 0], sizes = [16, 1], strides = [1, 1]} : vector<16x16xf32> to vector<16x1xf32>
    %23 = vector.extract_strided_slice %4 {offsets = [0, 0], sizes = [16, 15], strides = [1, 1]} : vector<16x16xf32> to vector<16x15xf32>
    %24 = tpu.concatenate %22, %23 in 1 : vector<16x1xf32>, vector<16x15xf32> -> vector<16x16xf32>
    %cst_4 = arith.constant 2.000000e+00 : f32
    %25 = vector.broadcast %cst_4 : f32 to vector<16x16xf32>
    %26 = arith.mulf %25, %4 : vector<16x16xf32>
    %27 = arith.addf %24, %26 : vector<16x16xf32>
    %28 = vector.extract_strided_slice %4 {offsets = [0, 1], sizes = [16, 15], strides = [1, 1]} : vector<16x16xf32> to vector<16x15xf32>
    %29 = vector.extract_strided_slice %4 {offsets = [0, 15], sizes = [16, 1], strides = [1, 1]} : vector<16x16xf32> to vector<16x1xf32>
    %30 = tpu.concatenate %28, %29 in 1 : vector<16x15xf32>, vector<16x1xf32> -> vector<16x16xf32>
    %31 = arith.addf %27, %30 : vector<16x16xf32>
    %32 = vector.extract_strided_slice %31 {offsets = [1, 0], sizes = [15, 16], strides = [1, 1]} : vector<16x16xf32> to vector<15x16xf32>
    %33 = vector.extract_strided_slice %31 {offsets = [15, 0], sizes = [1, 16], strides = [1, 1]} : vector<16x16xf32> to vector<1x16xf32>
    %34 = tpu.concatenate %32, %33 in 0 : vector<15x16xf32>, vector<1x16xf32> -> vector<16x16xf32>
    %35 = vector.extract_strided_slice %31 {offsets = [0, 0], sizes = [1, 16], strides = [1, 1]} : vector<16x16xf32> to vector<1x16xf32>
    %36 = vector.extract_strided_slice %31 {offsets = [0, 0], sizes = [15, 16], strides = [1, 1]} : vector<16x16xf32> to vector<15x16xf32>
    %37 = tpu.concatenate %35, %36 in 0 : vector<1x16xf32>, vector<15x16xf32> -> vector<16x16xf32>
    %38 = arith.subf %34, %37 : vector<16x16xf32>
    %cst_5 = arith.constant 0.000000e+00 : f32
    %39 = vector.broadcast %cst_5 : f32 to vector<16x16xf32>
    %40 = arith.cmpf one, %21, %39 : vector<16x16xf32>
    %cst_6 = arith.constant 0.000000e+00 : f32
    %41 = vector.broadcast %cst_6 : f32 to vector<16x16xf32>
    %42 = arith.cmpf one, %38, %41 : vector<16x16xf32>
    %43 = arith.ori %40, %42 : vector<16x16xi1>
    %44 = arith.extui %43 : vector<16x16xi1> to vector<16x16xi32>
    %45 = arith.sitofp %44 : vector<16x16xi32> to vector<16x16xf32>
    %46 = vector.shape_cast %4 : vector<16x16xf32> to vector<1x16x16xf32>
    %cst_7 = arith.constant dense<0.000000e+00> : vector<1xf32>
    %47 = vector.multi_reduction <add>, %46, %cst_7 [1, 2] : vector<1x16x16xf32> to vector<1xf32>
    %48 = vector.shape_cast %47 : vector<1xf32> to vector<1x1x1xf32>
    %49 = vector.extract %48[0, 0, 0] : f32 from vector<1x1x1xf32>
    %cst_8 = arith.constant 3.906250e-03 : f32
    %50 = arith.mulf %49, %cst_8 : f32
    %51 = vector.shape_cast %45 : vector<16x16xf32> to vector<1x16x16xf32>
    %cst_9 = arith.constant dense<0.000000e+00> : vector<1xf32>
    %52 = vector.multi_reduction <add>, %51, %cst_9 [1, 2] : vector<1x16x16xf32> to vector<1xf32>
    %53 = vector.shape_cast %52 : vector<1xf32> to vector<1x1x1xf32>
    %54 = vector.extract %53[0, 0, 0] : f32 from vector<1x1x1xf32>
    %cst_10 = arith.constant 3.906250e-03 : f32
    %55 = arith.mulf %54, %cst_10 : f32
    %c0_11 = arith.constant 0 : index
    %c0_12 = arith.constant 0 : index
    %c0_13 = arith.constant 0 : index
    %c0_14 = arith.constant 0 : index
    %56 = vector.load %arg2[%c0_11, %c0_12, %c0_13, %c0_14] : memref<1x2x16x16xf32, #tpu.memory_space<vmem>>, vector<1x1x16x16xf32>
    %57 = vector.shape_cast %56 : vector<1x1x16x16xf32> to vector<16x16xf32>
    %c0_15 = arith.constant 0 : index
    %c1 = arith.constant 1 : index
    %c0_16 = arith.constant 0 : index
    %c0_17 = arith.constant 0 : index
    %58 = vector.load %arg2[%c0_15, %c1, %c0_16, %c0_17] : memref<1x2x16x16xf32, #tpu.memory_space<vmem>>, vector<1x1x16x16xf32>
    %59 = vector.shape_cast %58 : vector<1x1x16x16xf32> to vector<16x16xf32>
    %60 = math.absf %57 : vector<16x16xf32>
    %cst_18 = arith.constant 0.000000e+00 : f32
    %61 = vector.broadcast %cst_18 : f32 to vector<16x16xf32>
    %62 = arith.subf %61, %60 : vector<16x16xf32>
    %63 = math.exp %62 : vector<16x16xf32>
    %64 = math.log1p %63 : vector<16x16xf32>
    %cst_19 = arith.constant 0.000000e+00 : f32
    %65 = vector.broadcast %cst_19 : f32 to vector<16x16xf32>
    %66 = arith.minimumf %57, %65 : vector<16x16xf32>
    %67 = arith.subf %66, %64 : vector<16x16xf32>
    %68 = arith.subf %67, %57 : vector<16x16xf32>
    %cst_20 = arith.constant 1.000000e+00 : f32
    %69 = arith.subf %cst_20, %50 : f32
    %cst_21 = arith.constant 0.000000e+00 : f32
    %70 = arith.subf %cst_21, %69 : f32
    %71 = vector.broadcast %70 : f32 to vector<16x16xf32>
    %72 = arith.mulf %71, %67 : vector<16x16xf32>
    %73 = arith.mulf %72, %4 : vector<16x16xf32>
    %74 = vector.broadcast %50 : f32 to vector<16x16xf32>
    %75 = arith.mulf %74, %68 : vector<16x16xf32>
    %cst_22 = arith.constant 1.000000e+00 : f32
    %76 = vector.broadcast %cst_22 : f32 to vector<16x16xf32>
    %77 = arith.subf %76, %4 : vector<16x16xf32>
    %78 = arith.mulf %75, %77 : vector<16x16xf32>
    %79 = arith.subf %73, %78 : vector<16x16xf32>
    %80 = vector.shape_cast %79 : vector<16x16xf32> to vector<1x16x16xf32>
    %cst_23 = arith.constant dense<0.000000e+00> : vector<1xf32>
    %81 = vector.multi_reduction <add>, %80, %cst_23 [1, 2] : vector<1x16x16xf32> to vector<1xf32>
    %82 = vector.shape_cast %81 : vector<1xf32> to vector<1x1x1xf32>
    %83 = vector.extract %82[0, 0, 0] : f32 from vector<1x1x1xf32>
    %cst_24 = arith.constant 0.000000e+00 : f32
    %84 = arith.addf %cst_24, %83 : f32
    %85 = math.absf %59 : vector<16x16xf32>
    %cst_25 = arith.constant 0.000000e+00 : f32
    %86 = vector.broadcast %cst_25 : f32 to vector<16x16xf32>
    %87 = arith.subf %86, %85 : vector<16x16xf32>
    %88 = math.exp %87 : vector<16x16xf32>
    %89 = math.log1p %88 : vector<16x16xf32>
    %cst_26 = arith.constant 0.000000e+00 : f32
    %90 = vector.broadcast %cst_26 : f32 to vector<16x16xf32>
    %91 = arith.minimumf %59, %90 : vector<16x16xf32>
    %92 = arith.subf %91, %89 : vector<16x16xf32>
    %93 = arith.subf %92, %59 : vector<16x16xf32>
    %cst_27 = arith.constant 1.000000e+00 : f32
    %94 = arith.subf %cst_27, %55 : f32
    %cst_28 = arith.constant 0.000000e+00 : f32
    %95 = arith.subf %cst_28, %94 : f32
    %96 = vector.broadcast %95 : f32 to vector<16x16xf32>
    %97 = arith.mulf %96, %92 : vector<16x16xf32>
    %98 = arith.mulf %97, %45 : vector<16x16xf32>
    %99 = vector.broadcast %55 : f32 to vector<16x16xf32>
    %100 = arith.mulf %99, %93 : vector<16x16xf32>
    %cst_29 = arith.constant 1.000000e+00 : f32
    %101 = vector.broadcast %cst_29 : f32 to vector<16x16xf32>
    %102 = arith.subf %101, %45 : vector<16x16xf32>
    %103 = arith.mulf %100, %102 : vector<16x16xf32>
    %104 = arith.subf %98, %103 : vector<16x16xf32>
    %105 = vector.shape_cast %104 : vector<16x16xf32> to vector<1x16x16xf32>
    %cst_30 = arith.constant dense<0.000000e+00> : vector<1xf32>
    %106 = vector.multi_reduction <add>, %105, %cst_30 [1, 2] : vector<1x16x16xf32> to vector<1xf32>
    %107 = vector.shape_cast %106 : vector<1xf32> to vector<1x1x1xf32>
    %108 = vector.extract %107[0, 0, 0] : f32 from vector<1x1x1xf32>
    %109 = arith.addf %84, %108 : f32
    %c0_31 = arith.constant 0 : index
    %c0_32 = arith.constant 0 : index
    %c0_33 = arith.constant 0 : index
    %c0_34 = arith.constant 0 : index
    %110 = vector.load %arg3[%c0_31, %c0_32, %c0_33, %c0_34] : memref<1x2x16x16xf32, #tpu.memory_space<vmem>>, vector<1x1x16x16xf32>
    %111 = vector.shape_cast %110 : vector<1x1x16x16xf32> to vector<16x16xf32>
    %c0_35 = arith.constant 0 : index
    %c1_36 = arith.constant 1 : index
    %c0_37 = arith.constant 0 : index
    %c0_38 = arith.constant 0 : index
    %112 = vector.load %arg3[%c0_35, %c1_36, %c0_37, %c0_38] : memref<1x2x16x16xf32, #tpu.memory_space<vmem>>, vector<1x1x16x16xf32>
    %113 = vector.shape_cast %112 : vector<1x1x16x16xf32> to vector<16x16xf32>
    %114 = math.absf %111 : vector<16x16xf32>
    %cst_39 = arith.constant 0.000000e+00 : f32
    %115 = vector.broadcast %cst_39 : f32 to vector<16x16xf32>
    %116 = arith.subf %115, %114 : vector<16x16xf32>
    %117 = math.exp %116 : vector<16x16xf32>
    %118 = math.log1p %117 : vector<16x16xf32>
    %cst_40 = arith.constant 0.000000e+00 : f32
    %119 = vector.broadcast %cst_40 : f32 to vector<16x16xf32>
    %120 = arith.minimumf %111, %119 : vector<16x16xf32>
    %121 = arith.subf %120, %118 : vector<16x16xf32>
    %122 = arith.subf %121, %111 : vector<16x16xf32>
    %cst_41 = arith.constant 1.000000e+00 : f32
    %123 = arith.subf %cst_41, %50 : f32
    %cst_42 = arith.constant 0.000000e+00 : f32
    %124 = arith.subf %cst_42, %123 : f32
    %125 = vector.broadcast %124 : f32 to vector<16x16xf32>
    %126 = arith.mulf %125, %121 : vector<16x16xf32>
    %127 = arith.mulf %126, %4 : vector<16x16xf32>
    %128 = vector.broadcast %50 : f32 to vector<16x16xf32>
    %129 = arith.mulf %128, %122 : vector<16x16xf32>
    %cst_43 = arith.constant 1.000000e+00 : f32
    %130 = vector.broadcast %cst_43 : f32 to vector<16x16xf32>
    %131 = arith.subf %130, %4 : vector<16x16xf32>
    %132 = arith.mulf %129, %131 : vector<16x16xf32>
    %133 = arith.subf %127, %132 : vector<16x16xf32>
    %134 = vector.shape_cast %133 : vector<16x16xf32> to vector<1x16x16xf32>
    %cst_44 = arith.constant dense<0.000000e+00> : vector<1xf32>
    %135 = vector.multi_reduction <add>, %134, %cst_44 [1, 2] : vector<1x16x16xf32> to vector<1xf32>
    %136 = vector.shape_cast %135 : vector<1xf32> to vector<1x1x1xf32>
    %137 = vector.extract %136[0, 0, 0] : f32 from vector<1x1x1xf32>
    %138 = arith.addf %109, %137 : f32
    %139 = math.absf %113 : vector<16x16xf32>
    %cst_45 = arith.constant 0.000000e+00 : f32
    %140 = vector.broadcast %cst_45 : f32 to vector<16x16xf32>
    %141 = arith.subf %140, %139 : vector<16x16xf32>
    %142 = math.exp %141 : vector<16x16xf32>
    %143 = math.log1p %142 : vector<16x16xf32>
    %cst_46 = arith.constant 0.000000e+00 : f32
    %144 = vector.broadcast %cst_46 : f32 to vector<16x16xf32>
    %145 = arith.minimumf %113, %144 : vector<16x16xf32>
    %146 = arith.subf %145, %143 : vector<16x16xf32>
    %147 = arith.subf %146, %113 : vector<16x16xf32>
    %cst_47 = arith.constant 1.000000e+00 : f32
    %148 = arith.subf %cst_47, %55 : f32
    %cst_48 = arith.constant 0.000000e+00 : f32
    %149 = arith.subf %cst_48, %148 : f32
    %150 = vector.broadcast %149 : f32 to vector<16x16xf32>
    %151 = arith.mulf %150, %146 : vector<16x16xf32>
    %152 = arith.mulf %151, %45 : vector<16x16xf32>
    %153 = vector.broadcast %55 : f32 to vector<16x16xf32>
    %154 = arith.mulf %153, %147 : vector<16x16xf32>
    %cst_49 = arith.constant 1.000000e+00 : f32
    %155 = vector.broadcast %cst_49 : f32 to vector<16x16xf32>
    %156 = arith.subf %155, %45 : vector<16x16xf32>
    %157 = arith.mulf %154, %156 : vector<16x16xf32>
    %158 = arith.subf %152, %157 : vector<16x16xf32>
    %159 = vector.shape_cast %158 : vector<16x16xf32> to vector<1x16x16xf32>
    %cst_50 = arith.constant dense<0.000000e+00> : vector<1xf32>
    %160 = vector.multi_reduction <add>, %159, %cst_50 [1, 2] : vector<1x16x16xf32> to vector<1xf32>
    %161 = vector.shape_cast %160 : vector<1xf32> to vector<1x1x1xf32>
    %162 = vector.extract %161[0, 0, 0] : f32 from vector<1x1x1xf32>
    %163 = arith.addf %138, %162 : f32
    %c0_51 = arith.constant 0 : index
    %164 = memref.load %arg5[%c0_51] : memref<1xf32, #tpu.memory_space<smem>>
    %165 = arith.addf %164, %163 : f32
    %c0_52 = arith.constant 0 : index
    %166 = memref.load %arg5[%c0_52] : memref<1xf32, #tpu.memory_space<smem>>
    memref.store %165, %arg5[%c0_52] : memref<1xf32, #tpu.memory_space<smem>>
    %c1_i32 = arith.constant 1 : i32
    %167 = arith.cmpi eq, %arg0, %c1_i32 : i32
    %168 = arith.extui %167 : i1 to i32
    %c0_i32_53 = arith.constant 0 : i32
    %169 = arith.cmpi ne, %168, %c0_i32_53 : i32
    scf.if %169 {
      %c0_54 = arith.constant 0 : index
      %170 = memref.load %arg5[%c0_54] : memref<1xf32, #tpu.memory_space<smem>>
      %cst_55 = arith.constant 9.765625E-4 : f32
      %171 = arith.mulf %170, %cst_55 : f32
      %c0_56 = arith.constant 0 : index
      %c0_57 = arith.constant 0 : index
      %172 = memref.load %arg4[%c0_56, %c0_57] : memref<1x1xf32, #tpu.memory_space<smem>>
      memref.store %171, %arg4[%c0_56, %c0_57] : memref<1x1xf32, #tpu.memory_space<smem>>
    } else {
    }
    return
  }
  func.func @transform_0(%arg0: i32) -> (i32, i32, i32, i32) {
    %c0_i32 = arith.constant 0 : i32
    %c0_i32_0 = arith.constant 0 : i32
    %c0_i32_1 = arith.constant 0 : i32
    %c0_i32_2 = arith.constant 0 : i32
    return %arg0, %c0_i32, %c0_i32_0, %c0_i32_1 : i32, i32, i32, i32
  }
  func.func @transform_1(%arg0: i32) -> (i32, i32, i32, i32) {
    %c0_i32 = arith.constant 0 : i32
    %c0_i32_0 = arith.constant 0 : i32
    %c0_i32_1 = arith.constant 0 : i32
    %c0_i32_2 = arith.constant 0 : i32
    return %arg0, %c0_i32, %c0_i32_0, %c0_i32_1 : i32, i32, i32, i32
  }
  func.func @transform_2(%arg0: i32) -> (i32, i32, i32, i32) {
    %c0_i32 = arith.constant 0 : i32
    %c0_i32_0 = arith.constant 0 : i32
    %c0_i32_1 = arith.constant 0 : i32
    %c0_i32_2 = arith.constant 0 : i32
    return %arg0, %c0_i32, %c0_i32_0, %c0_i32_1 : i32, i32, i32, i32
  }
  func.func @transform_3(%arg0: i32) -> (i32, i32) {
    %c0_i32 = arith.constant 0 : i32
    %c0_i32_0 = arith.constant 0 : i32
    %c0_i32_1 = arith.constant 0 : i32
    return %c0_i32, %c0_i32_0 : i32, i32
  }
}

</mosaic_0001>

<llo_original>
// kernel: tpu_custom_call.1
$region0: #{tpu_custom_call.1}
  #allocation0 [shape = 'u32[]', space=smem, size = 0x4, offset = 0x4, fixed_abs, tag = 'smem constant byte address 0x4 - core index']
  #allocation1 [shape = 'u32[72,128]{1,0:T(1,128)}', space=vmem, size = 0x9000, scoped, tag = 'internal scratch']
  #allocation2 [shape = 'f32[1]{0:T(128)}', space=smem, size = 0x200, scoped, tag = 'scratch operand']
  %s0 = inlined_call_operand.hbm [shape: f32[2,1,16,16], index: 0, kind: input, shape index: {}]
  %s1 = inlined_call_operand.hbm [shape: f32[2,2,16,16], index: 1, kind: input, shape index: {}]
  %s2 = inlined_call_operand.hbm [shape: f32[2,2,16,16], index: 2, kind: input, shape index: {}]
  %s3 = inlined_call_operand.hbm [shape: f32[1,1], index: 3, kind: output, shape index: {}]
  %s4 = sld [smem:[#allocation0]]
  $region65: #{tpu_custom_call.1} parent=0
    _
  %s6 = ssub.s32 1, %s4
  %s7 = scalar_select 0, %s6, %s4
  $region1: #{tpu_custom_call.1} parent=0
    #allocation3 [shape = 'u8[16384]{0}', space=vmem, size = 0x4000, scoped, tag = 'input window, operand 0']
    #allocation4 [shape = 's32[2]{0}', space=sflag, size = 0x8, scoped, tag = 'scoped memory for tpu_custom_call.1']
    #allocation5 [shape = 's32[2]{0}', space=sflag, size = 0x8, scoped, tag = 'scoped memory for tpu_custom_call.1']
    #allocation6 [shape = 'u8[32768]{0}', space=vmem, size = 0x8000, scoped, tag = 'input window, operand 1']
    #allocation7 [shape = 's32[2]{0}', space=sflag, size = 0x8, scoped, tag = 'scoped memory for tpu_custom_call.1']
    #allocation8 [shape = 'u8[32768]{0}', space=vmem, size = 0x8000, scoped, tag = 'input window, operand 2']
    #allocation9 [shape = 'u8[512]{0}', space=smem, size = 0x200, scoped, tag = 'output window, operand 0, single buffered']
    %8 = vsyncpa [#allocation4], 0
    %s9 = scalar_lea.sflag [#allocation4], 1
    %10 = vsyncpa %s9, 0
    %11 = vsyncpa [#allocation7], 0
    %s12 = scalar_lea.sflag [#allocation7], 1
    %13 = vsyncpa %s12, 0
    %14 = vsyncpa [#allocation5], 0
    loop: start=0, step=1, limit=4
    $region2: #{tpu_custom_call.1} parent=1 // loop_pre_header
      _
    $region3: #{tpu_custom_call.1} parent=1 // loop_header
      %s16 = sphi 0, %s20
      %p17 = scmp.ge.s32.totalorder %s16, 4
      %s26 = sphi 0, %s28
      %s29 = sphi 0, %s26
      %s30 = sphi 0, %s29
      %s46 = sphi 0, %s30
      %s52 = sphi 0, %s54
      %s55 = sphi 0, %s52
      %s56 = sphi 0, %s55
      %s72 = sphi 0, %s56
      %s78 = sphi 0, %s80
      %s81 = sphi 0, %s78
      %s82 = sphi 0, %s81
      %s98 = sphi 0, %s82
      %s102 = sphi 0, %s102
      %s104 = sphi 0, %s102
      %s105 = sphi 0, %s104
      %s119 = sphi 0, %s105
    $region4: #{tpu_custom_call.1} parent=1 // loop_header_branch
      %19 = sbr.rel (%p17) target = $region8
    $region5: #{tpu_custom_call.1} parent=1 // loop_body
      %s21 = ssub.s32 %s16, 1
      %s22 = ssub.s32 %s16, 2
      %s23 = sadd.s32 %s16, 1
      %s24 = ssub.s32 %s16, %s23
      %p25 = scmp.eq.s32.totalorder %s24, 0
      %s27 = sadd.s32 %s26, 1
      %s28 = scalar_select %p25, %s26, %s27
      %p31 = pneg %p25
      %p32 = scmp.eq.s32.totalorder %s16, 1
      %p33 = por %p31, %p32
      %p34 = scmp.ne.s32.totalorder %s26, %s29
      %p35 = scmp.eq.s32.totalorder %s16, 0
      %p36 = por %p34, %p35
      %p37 = scmp.ne.s32.totalorder %s26, %s29
      %p38 = scmp.eq.s32.totalorder %s21, 1
      %p39 = por %p37, %p38
      %p40 = scmp.ne.s32.totalorder %s29, %s30
      %p41 = scmp.eq.s32.totalorder %s21, 0
      %p42 = por %p40, %p41
      %p43 = scmp.ne.s32.totalorder %s29, %s30
      %p44 = scmp.eq.s32.totalorder %s22, 1
      %p45 = por %p43, %p44
      %p47 = scmp.ne.s32.totalorder %s30, %s46
      %p48 = scmp.eq.s32.totalorder %s22, 0
      %p49 = por %p47, %p48
      %s50 = ssub.s32 %s16, %s23
      %p51 = scmp.eq.s32.totalorder %s50, 0
      %s53 = sadd.s32 %s52, 1
      %s54 = scalar_select %p51, %s52, %s53
      %p57 = pneg %p51
      %p58 = scmp.eq.s32.totalorder %s16, 1
      %p59 = por %p57, %p58
      %p60 = scmp.ne.s32.totalorder %s52, %s55
      %p61 = scmp.eq.s32.totalorder %s16, 0
      %p62 = por %p60, %p61
      %p63 = scmp.ne.s32.totalorder %s52, %s55
      %p64 = scmp.eq.s32.totalorder %s21, 1
      %p65 = por %p63, %p64
      %p66 = scmp.ne.s32.totalorder %s55, %s56
      %p67 = scmp.eq.s32.totalorder %s21, 0
      %p68 = por %p66, %p67
      %p69 = scmp.ne.s32.totalorder %s55, %s56
      %p70 = scmp.eq.s32.totalorder %s22, 1
      %p71 = por %p69, %p70
      %p73 = scmp.ne.s32.totalorder %s56, %s72
      %p74 = scmp.eq.s32.totalorder %s22, 0
      %p75 = por %p73, %p74
      %s76 = ssub.s32 %s16, %s23
      %p77 = scmp.eq.s32.totalorder %s76, 0
      %s79 = sadd.s32 %s78, 1
      %s80 = scalar_select %p77, %s78, %s79
      %p83 = pneg %p77
      %p84 = scmp.eq.s32.totalorder %s16, 1
      %p85 = por %p83, %p84
      %p86 = scmp.ne.s32.totalorder %s78, %s81
      %p87 = scmp.eq.s32.totalorder %s16, 0
      %p88 = por %p86, %p87
      %p89 = scmp.ne.s32.totalorder %s78, %s81
      %p90 = scmp.eq.s32.totalorder %s21, 1
      %p91 = por %p89, %p90
      %p92 = scmp.ne.s32.totalorder %s81, %s82
      %p93 = scmp.eq.s32.totalorder %s21, 0
      %p94 = por %p92, %p93
      %p95 = scmp.ne.s32.totalorder %s81, %s82
      %p96 = scmp.eq.s32.totalorder %s22, 1
      %p97 = por %p95, %p96
      %p99 = scmp.ne.s32.totalorder %s82, %s98
      %p100 = scmp.eq.s32.totalorder %s22, 0
      %p101 = por %p99, %p100
      %s103 = sadd.s32 %s102, 1
      %p106 = scmp.eq.s32.totalorder %s16, 1
      %p107 = scmp.ne.s32.totalorder %s102, %s104
      %p108 = scmp.eq.s32.totalorder %s16, 0
      %p109 = por %p107, %p108
      %p110 = scmp.ne.s32.totalorder %s102, %s104
      %p111 = scmp.eq.s32.totalorder %s21, 1
      %p112 = por %p110, %p111
      %p113 = scmp.ne.s32.totalorder %s104, %s105
      %p114 = scmp.eq.s32.totalorder %s21, 0
      %p115 = por %p113, %p114
      %p116 = scmp.ne.s32.totalorder %s104, %s105
      %p117 = scmp.eq.s32.totalorder %s22, 1
      %p118 = por %p116, %p117
      %p120 = scmp.ne.s32.totalorder %s105, %s119
      %p121 = scmp.eq.s32.totalorder %s22, 0
      %p122 = por %p120, %p121
      %p123 = scmp.le.s32.totalorder 1, %s16
      %p124 = scmp.lt.s32.totalorder %s16, 3
      %p125 = pnand %p123, %p124
      %p126 = pneg %p125
      // Predicated region
      $region9: #{tpu_custom_call.1} parent=5 // pred_check
        _
      $region10: #{tpu_custom_call.1} parent=5 // pred_check_branch
        %128 = sbr.rel (%p125) target = $region12
      $region11: #{tpu_custom_call.1} parent=5 // pred_region
        %s129 = ssub.s32 %s16, 1
      $region12: #{tpu_custom_call.1} parent=5 // pred_fallthru
        _
      %p130 = scmp.lt.s32.totalorder %s16, 2
      // Predicated region
      $region13: #{tpu_custom_call.1} parent=5 // pred_check
        %p131 = pneg %p130
      $region14: #{tpu_custom_call.1} parent=5 // pred_check_branch
        %133 = sbr.rel (%p131) target = $region16
      $region15: #{tpu_custom_call.1} parent=5 // pred_region
        // Predicated region
        $region17: #{tpu_custom_call.1} parent=15 // pred_check
          %p134 = pneg %p36
        $region18: #{tpu_custom_call.1} parent=15 // pred_check_branch
          %136 = sbr.rel (%p134) target = $region20
        $region19: #{tpu_custom_call.1} parent=15 // pred_region
          %s137 = sand.u32 %s26, 1
          %s138 = scalar_lea.sflag [#allocation4], %s137
          %s139 = sand.u32 %s26, 1
          %s140 = smul.addr %s139, 16
          %s141 = scalar_lea.vmem [#allocation3], %s140
          %143 = vsyncadd %s138, 0
          %s144 = smul.addr %s16, 2
          %s145 = smul.addr %s144, 8
          %s146 = scalar_lea.hbm %s0, %s145
          %s147 = sshll.u32 %s146, 4
          %s148 = int_to_ptr.hbm [resolvable:$true] %s147
          %s149 = sshll.u32 %s141, 4
          %s150 = int_to_ptr.vmem [resolvable:$true] %s149
          %155 = dma.hbm_to_vmem [thread:$0]  %s148, 256, %s150, %s138, 128, 128, 8
        $region20: #{tpu_custom_call.1} parent=15 // pred_fallthru
          _
        // Predicated region
        $region21: #{tpu_custom_call.1} parent=15 // pred_check
          %p156 = pneg %p62
        $region22: #{tpu_custom_call.1} parent=15 // pred_check_branch
          %158 = sbr.rel (%p156) target = $region24
        $region23: #{tpu_custom_call.1} parent=15 // pred_region
          %s159 = sand.u32 %s16, 1
          %s160 = scalar_lea.sflag [#allocation7], %s159
          %s161 = sand.u32 %s52, 1
          %s162 = smul.addr %s161, 32
          %s163 = scalar_lea.vmem [#allocation6], %s162
          %165 = vsyncadd %s160, 0
          %s166 = smul.addr %s16, 4
          %s167 = smul.addr %s166, 8
          %s168 = scalar_lea.hbm %s1, %s167
          %s169 = sshll.u32 %s168, 4
          %s170 = int_to_ptr.hbm [resolvable:$true] %s169
          %s171 = sshll.u32 %s163, 4
          %s172 = int_to_ptr.vmem [resolvable:$true] %s171
          %177 = dma.hbm_to_vmem [thread:$0]  %s170, 512, %s172, %s160, 128, 128, 8
        $region24: #{tpu_custom_call.1} parent=15 // pred_fallthru
          _
        // Predicated region
        $region25: #{tpu_custom_call.1} parent=15 // pred_check
          %p178 = pneg %p88
        $region26: #{tpu_custom_call.1} parent=15 // pred_check_branch
          %180 = sbr.rel (%p178) target = $region28
        $region27: #{tpu_custom_call.1} parent=15 // pred_region
          %s181 = sand.u32 %s16, 1
          %s182 = scalar_lea.sflag [#allocation7], %s181
          %s183 = sand.u32 %s78, 1
          %s184 = smul.addr %s183, 32
          %s185 = scalar_lea.vmem [#allocation8], %s184
          %187 = vsyncadd %s182, 0
          %s188 = smul.addr %s16, 4
          %s189 = smul.addr %s188, 8
          %s190 = scalar_lea.hbm %s2, %s189
          %s191 = sshll.u32 %s190, 4
          %s192 = int_to_ptr.hbm [resolvable:$true] %s191
          %s193 = sshll.u32 %s185, 4
          %s194 = int_to_ptr.vmem [resolvable:$true] %s193
          %199 = dma.hbm_to_vmem [thread:$0]  %s192, 512, %s194, %s182, 128, 128, 8
        $region28: #{tpu_custom_call.1} parent=15 // pred_fallthru
          _
      $region16: #{tpu_custom_call.1} parent=5 // pred_fallthru
        _
      %p200 = scmp.le.s32.totalorder 1, %s16
      %p201 = scmp.lt.s32.totalorder %s16, 3
      %p202 = pnand %p200, %p201
      %p203 = pneg %p202
      // Predicated region
      $region29: #{tpu_custom_call.1} parent=5 // pred_check
        _
      $region30: #{tpu_custom_call.1} parent=5 // pred_check_branch
        %205 = sbr.rel (%p202) target = $region32
      $region31: #{tpu_custom_call.1} parent=5 // pred_region
        %s206 = ssub.s32 %s16, 1
        %s207 = sand.u32 %s29, 1
        %s208 = scalar_lea.sflag [#allocation4], %s207
        %s209 = sand.u32 %s29, 1
        %s210 = smul.addr %s209, 16
        %s211 = scalar_lea.vmem [#allocation3], %s210
        // Predicated region
        $region33: #{tpu_custom_call.1} parent=31 // pred_check
          %p212 = pneg %p42
        $region34: #{tpu_custom_call.1} parent=31 // pred_check_branch
          %214 = sbr.rel (%p212) target = $region36
        $region35: #{tpu_custom_call.1} parent=31 // pred_region
          %216 = dma.done %s208, 256
        $region36: #{tpu_custom_call.1} parent=31 // pred_fallthru
          _
        %s217 = sand.u32 %s21, 1
        %s218 = scalar_lea.sflag [#allocation7], %s217
        %s219 = sand.u32 %s55, 1
        %s220 = smul.addr %s219, 32
        %s221 = scalar_lea.vmem [#allocation6], %s220
        // Predicated region
        $region37: #{tpu_custom_call.1} parent=31 // pred_check
          %p222 = pneg %p68
        $region38: #{tpu_custom_call.1} parent=31 // pred_check_branch
          %224 = sbr.rel (%p222) target = $region40
        $region39: #{tpu_custom_call.1} parent=31 // pred_region
          %226 = dma.done %s218, 512
        $region40: #{tpu_custom_call.1} parent=31 // pred_fallthru
          _
        %s227 = sand.u32 %s21, 1
        %s228 = scalar_lea.sflag [#allocation7], %s227
        %s229 = sand.u32 %s81, 1
        %s230 = smul.addr %s229, 32
        %s231 = scalar_lea.vmem [#allocation8], %s230
        // Predicated region
        $region41: #{tpu_custom_call.1} parent=31 // pred_check
          %p232 = pneg %p94
        $region42: #{tpu_custom_call.1} parent=31 // pred_check_branch
          %234 = sbr.rel (%p232) target = $region44
        $region43: #{tpu_custom_call.1} parent=31 // pred_region
          %236 = dma.done %s228, 512
        $region44: #{tpu_custom_call.1} parent=31 // pred_fallthru
          _
        %s237 = sand.u32 %s29, 1
        %s238 = scalar_lea.sflag [#allocation4], %s237
        %s239 = sand.u32 %s29, 1
        %s240 = smul.addr %s239, 16
        %s241 = scalar_lea.vmem [#allocation3], %s240
        %p242 = pneg %p42
        %p243 = pneg %p39
        %s244 = sand.u32 %s21, 1
        %s245 = scalar_lea.sflag [#allocation7], %s244
        %s246 = sand.u32 %s55, 1
        %s247 = smul.addr %s246, 32
        %s248 = scalar_lea.vmem [#allocation6], %s247
        %p249 = pneg %p68
        %p250 = pneg %p65
        %s251 = sand.u32 %s21, 1
        %s252 = scalar_lea.sflag [#allocation7], %s251
        %s253 = sand.u32 %s81, 1
        %s254 = smul.addr %s253, 32
        %s255 = scalar_lea.vmem [#allocation8], %s254
        %p256 = pneg %p94
        %p257 = pneg %p91
        %p258 = pneg %p115
        %p259 = pneg %p112
        %p260 = scmp.eq.s32.totalorder %s21, 0
        // Predicated region
        $region45: #{tpu_custom_call.1} parent=31 // pred_check
          %p261 = pneg %p260
        $region46: #{tpu_custom_call.1} parent=31 // pred_check_branch
          %263 = sbr.rel (%p261) target = $region48
        $region47: #{tpu_custom_call.1} parent=31 // pred_region
          %s264 = scalar_lea.smem [#allocation2], 0
          %265 = sst [smem:[%s264]] 0.0
        $region48: #{tpu_custom_call.1} parent=31 // pred_fallthru
          _
        %v266 = vld [vmem:[%s211] sm:$0xff]
        %v267 = vld [vmem:[%s211 + $0x8] sm:$0xff]
        %vm270 = vcmask 1040384
        %v271 = vrot.slane %v266, 7
        %v272 = vrot.slane %v267, 7
        %v273 = vsel %vm270, %v271, %v272
        %v276 = vsel %vm270, %v266, %v271
        %v277 = vmul.f32 %v266, 2.0
        %v278 = vmul.f32 %v267, 2.0
        %v279 = vadd.f32 %v276, %v277
        %v280 = vadd.f32 %v273, %v278
        %vm281 = vcmask 1046528
        %v282 = vrot.slane %v266, 1
        %v283 = vrot.slane %v267, 1
        %v284 = vsel %vm281, %v282, %v283
        %v287 = vsel %vm281, %v283, %v267
        %v288 = vadd.f32 %v279, %v284
        %v289 = vadd.f32 %v280, %v287
        %292 = vrot.lane.b32.xlu0 %v288, 127
        %v293 = vpop.permute.xlu0 %292
        %294 = vrot.lane.b32.xlu0 %v289, 127
        %v295 = vpop.permute.xlu0 %294
        %vm298 = vcmask 121856
        %v299 = vsel %vm298, %v293, %v288
        %v300 = vsel %vm298, %v295, %v289
        %301 = vrot.lane.b32.xlu0 %v288, 1
        %v302 = vpop.permute.xlu0 %301
        %303 = vrot.lane.b32.xlu0 %v289, 1
        %v304 = vpop.permute.xlu0 %303
        %vm307 = vcmask 7168
        %v308 = vsel %vm307, %v288, %v302
        %v309 = vsel %vm307, %v289, %v304
        %v310 = vsub.f32 %v299, %v308
        %v311 = vsub.f32 %v300, %v309
        %312 = vrot.lane.b32.xlu0 %v266, 1
        %v313 = vpop.permute.xlu0 %312
        %314 = vrot.lane.b32.xlu0 %v267, 1
        %v315 = vpop.permute.xlu0 %314
        %v318 = vsel %vm307, %v266, %v313
        %v319 = vsel %vm307, %v267, %v315
        %v320 = vadd.f32 %v318, %v277
        %v321 = vadd.f32 %v319, %v278
        %322 = vrot.lane.b32.xlu0 %v266, 127
        %v323 = vpop.permute.xlu0 %322
        %324 = vrot.lane.b32.xlu0 %v267, 127
        %v325 = vpop.permute.xlu0 %324
        %v328 = vsel %vm298, %v323, %v266
        %v329 = vsel %vm298, %v325, %v267
        %v330 = vadd.f32 %v320, %v328
        %v331 = vadd.f32 %v321, %v329
        %v334 = vrot.slane %v330, 1
        %v335 = vrot.slane %v331, 1
        %v336 = vsel %vm281, %v334, %v335
        %v339 = vsel %vm281, %v335, %v331
        %v340 = vrot.slane %v330, 7
        %v341 = vrot.slane %v331, 7
        %v342 = vsel %vm270, %v340, %v341
        %v345 = vsel %vm270, %v330, %v340
        %v346 = vsub.f32 %v336, %v345
        %v347 = vsub.f32 %v339, %v342
        %vm348 = vcmp.ne.f32.partialorder %v310, 0.0
        %vm349 = vcmp.ne.f32.partialorder %v311, 0.0
        %vm350 = vcmp.ne.f32.partialorder %v346, 0.0
        %vm351 = vcmp.ne.f32.partialorder %v347, 0.0
        %vm352 = vmor %vm348, %vm350
        %vm353 = vmor %vm349, %vm351
        %v354 = vsel %vm352, 1, 0
        %v355 = vsel %vm353, 1, 0
        %v356 = vcvt.s32.f32 %v354
        %v357 = vcvt.s32.f32 %v355
        %vm358 = vcmask 130048
        %v359 = vsel %vm358, %v266, 0.0
        %v360 = vsel %vm358, %v267, 0.0
        %v361 = vadd.f32 %v359, %v360
        %362 = vadd.xlane.f32.xlu0 %v361
        %v363 = vpop.xlane.xlu0 %362
        %v364 = vrot.slane %v363, 4
        %v365 = vadd.f32 %v363, %v364
        %v366 = vrot.slane %v365, 2
        %v367 = vadd.f32 %v365, %v366
        %v368 = vrot.slane %v367, 1
        %v369 = vadd.f32 %v367, %v368
        %s370 = vtos %v369
        %s371 = smul.f32 %s370, 0.00390625
        %v372 = vsel %vm358, %v356, 0.0
        %v373 = vsel %vm358, %v357, 0.0
        %v374 = vadd.f32 %v372, %v373
        %375 = vadd.xlane.f32.xlu0 %v374
        %v376 = vpop.xlane.xlu0 %375
        %v377 = vrot.slane %v376, 4
        %v378 = vadd.f32 %v376, %v377
        %v379 = vrot.slane %v378, 2
        %v380 = vadd.f32 %v378, %v379
        %v381 = vrot.slane %v380, 1
        %v382 = vadd.f32 %v380, %v381
        %s383 = vtos %v382
        %s384 = smul.f32 %s383, 0.00390625
        %v385 = vld [vmem:[%s221] sm:$0xff]
        %v386 = vld [vmem:[%s221 + $0x8] sm:$0xff]
        %s387 = scalar_lea.vmem %s221, 16 [#allocation6]
        %v388 = vld [vmem:[%s387] sm:$0xff]
        %v389 = vld [vmem:[%s387 + $0x8] sm:$0xff]
        %v390 = vand.u32 2147483647, %v385
        %v391 = vand.u32 2147483647, %v386
        %v392 = vsub.f32 0.0, %v390
        %v393 = vsub.f32 0.0, %v391
        %v394 = vmul.f32 %v392, 1.442695
        %v395 = vpow.pop %v394
        %v396 = vmul.f32 %v393, 1.442695
        %v397 = vpow.pop %v396
        %v398 = vadd.f32 %v395, 1.0
        %v399 = vlog2.pop %v398
        %v400 = vmul.f32 %v399, 0.6931472
        %v401 = vmul.f32 -0.5, %v395
        %v402 = vadd.f32 %v401, 1.0
        %v403 = vmul.f32 %v402, %v395
        %v404 = vand.u32 2147483647, %v395
        %vm405 = vcmp.lt.f32.partialorder %v404, 0.0004427343
        %v406 = vsel %vm405, %v403, %v400
        %v407 = vadd.f32 %v397, 1.0
        %v408 = vlog2.pop %v407
        %v409 = vmul.f32 %v408, 0.6931472
        %v410 = vmul.f32 -0.5, %v397
        %v411 = vadd.f32 %v410, 1.0
        %v412 = vmul.f32 %v411, %v397
        %v413 = vand.u32 2147483647, %v397
        %vm414 = vcmp.lt.f32.partialorder %v413, 0.0004427343
        %v415 = vsel %vm414, %v412, %v409
        %v416 = vmin.f32 %v385, 0.0
        %v417 = vmin.f32 %v386, 0.0
        %v418 = vsub.f32 %v416, %v406
        %v419 = vsub.f32 %v417, %v415
        %v420 = vsub.f32 %v418, %v385
        %v421 = vsub.f32 %v419, %v386
        %s422 = ssub.f32 1.0, %s371
        %s423 = ssub.f32 0.0, %s422
        %v424 = vstv %s423
        %v425 = vmul.f32 %v424, %v418
        %v426 = vmul.f32 %v424, %v419
        %v427 = vmul.f32 %v425, %v266
        %v428 = vmul.f32 %v426, %v267
        %v429 = vstv %s371
        %v430 = vmul.f32 %v429, %v420
        %v431 = vmul.f32 %v429, %v421
        %v432 = vsub.f32 1.0, %v266
        %v433 = vsub.f32 1.0, %v267
        %v434 = vmul.f32 %v430, %v432
        %v435 = vmul.f32 %v431, %v433
        %v436 = vsub.f32 %v427, %v434
        %v437 = vsub.f32 %v428, %v435
        %v438 = vsel %vm358, %v436, 0.0
        %v439 = vsel %vm358, %v437, 0.0
        %v440 = vadd.f32 %v438, %v439
        %441 = vadd.xlane.f32.xlu0 %v440
        %v442 = vpop.xlane.xlu0 %441
        %v443 = vrot.slane %v442, 4
        %v444 = vadd.f32 %v442, %v443
        %v445 = vrot.slane %v444, 2
        %v446 = vadd.f32 %v444, %v445
        %v447 = vrot.slane %v446, 1
        %v448 = vadd.f32 %v446, %v447
        %s449 = vtos %v448
        %s450 = sadd.f32 %s449, 0.0
        %v451 = vand.u32 2147483647, %v388
        %v452 = vand.u32 2147483647, %v389
        %v453 = vsub.f32 0.0, %v451
        %v454 = vsub.f32 0.0, %v452
        %v455 = vmul.f32 %v453, 1.442695
        %v456 = vpow.pop %v455
        %v457 = vmul.f32 %v454, 1.442695
        %v458 = vpow.pop %v457
        %v459 = vadd.f32 %v456, 1.0
        %v460 = vlog2.pop %v459
        %v461 = vmul.f32 %v460, 0.6931472
        %v462 = vmul.f32 -0.5, %v456
        %v463 = vadd.f32 %v462, 1.0
        %v464 = vmul.f32 %v463, %v456
        %v465 = vand.u32 2147483647, %v456
        %vm466 = vcmp.lt.f32.partialorder %v465, 0.0004427343
        %v467 = vsel %vm466, %v464, %v461
        %v468 = vadd.f32 %v458, 1.0
        %v469 = vlog2.pop %v468
        %v470 = vmul.f32 %v469, 0.6931472
        %v471 = vmul.f32 -0.5, %v458
        %v472 = vadd.f32 %v471, 1.0
        %v473 = vmul.f32 %v472, %v458
        %v474 = vand.u32 2147483647, %v458
        %vm475 = vcmp.lt.f32.partialorder %v474, 0.0004427343
        %v476 = vsel %vm475, %v473, %v470
        %v477 = vmin.f32 %v388, 0.0
        %v478 = vmin.f32 %v389, 0.0
        %v479 = vsub.f32 %v477, %v467
        %v480 = vsub.f32 %v478, %v476
        %v481 = vsub.f32 %v479, %v388
        %v482 = vsub.f32 %v480, %v389
        %s483 = ssub.f32 1.0, %s384
        %s484 = ssub.f32 0.0, %s483
        %v485 = vstv %s484
        %v486 = vmul.f32 %v485, %v479
        %v487 = vmul.f32 %v485, %v480
        %v488 = vmul.f32 %v486, %v356
        %v489 = vmul.f32 %v487, %v357
        %v490 = vstv %s384
        %v491 = vmul.f32 %v490, %v481
        %v492 = vmul.f32 %v490, %v482
        %v493 = vsub.f32 1.0, %v356
        %v494 = vsub.f32 1.0, %v357
        %v495 = vmul.f32 %v491, %v493
        %v496 = vmul.f32 %v492, %v494
        %v497 = vsub.f32 %v488, %v495
        %v498 = vsub.f32 %v489, %v496
        %v499 = vsel %vm358, %v497, 0.0
        %v500 = vsel %vm358, %v498, 0.0
        %v501 = vadd.f32 %v499, %v500
        %502 = vadd.xlane.f32.xlu0 %v501
        %v503 = vpop.xlane.xlu0 %502
        %v504 = vrot.slane %v503, 4
        %v505 = vadd.f32 %v503, %v504
        %v506 = vrot.slane %v505, 2
        %v507 = vadd.f32 %v505, %v506
        %v508 = vrot.slane %v507, 1
        %v509 = vadd.f32 %v507, %v508
        %s510 = vtos %v509
        %s511 = sadd.f32 %s450, %s510
        %v512 = vld [vmem:[%s231] sm:$0xff]
        %v513 = vld [vmem:[%s231 + $0x8] sm:$0xff]
        %s514 = scalar_lea.vmem %s231, 16 [#allocation8]
        %v515 = vld [vmem:[%s514] sm:$0xff]
        %v516 = vld [vmem:[%s514 + $0x8] sm:$0xff]
        %v517 = vand.u32 2147483647, %v512
        %v518 = vand.u32 2147483647, %v513
        %v519 = vsub.f32 0.0, %v517
        %v520 = vsub.f32 0.0, %v518
        %v521 = vmul.f32 %v519, 1.442695
        %v522 = vpow.pop %v521
        %v523 = vmul.f32 %v520, 1.442695
        %v524 = vpow.pop %v523
        %v525 = vadd.f32 %v522, 1.0
        %v526 = vlog2.pop %v525
        %v527 = vmul.f32 %v526, 0.6931472
        %v528 = vmul.f32 -0.5, %v522
        %v529 = vadd.f32 %v528, 1.0
        %v530 = vmul.f32 %v529, %v522
        %v531 = vand.u32 2147483647, %v522
        %vm532 = vcmp.lt.f32.partialorder %v531, 0.0004427343
        %v533 = vsel %vm532, %v530, %v527
        %v534 = vadd.f32 %v524, 1.0
        %v535 = vlog2.pop %v534
        %v536 = vmul.f32 %v535, 0.6931472
        %v537 = vmul.f32 -0.5, %v524
        %v538 = vadd.f32 %v537, 1.0
        %v539 = vmul.f32 %v538, %v524
        %v540 = vand.u32 2147483647, %v524
        %vm541 = vcmp.lt.f32.partialorder %v540, 0.0004427343
        %v542 = vsel %vm541, %v539, %v536
        %v543 = vmin.f32 %v512, 0.0
        %v544 = vmin.f32 %v513, 0.0
        %v545 = vsub.f32 %v543, %v533
        %v546 = vsub.f32 %v544, %v542
        %v547 = vsub.f32 %v545, %v512
        %v548 = vsub.f32 %v546, %v513
        %v549 = vmul.f32 %v424, %v545
        %v550 = vmul.f32 %v424, %v546
        %v551 = vmul.f32 %v549, %v266
        %v552 = vmul.f32 %v550, %v267
        %v553 = vmul.f32 %v429, %v547
        %v554 = vmul.f32 %v429, %v548
        %v555 = vmul.f32 %v553, %v432
        %v556 = vmul.f32 %v554, %v433
        %v557 = vsub.f32 %v551, %v555
        %v558 = vsub.f32 %v552, %v556
        %v559 = vsel %vm358, %v557, 0.0
        %v560 = vsel %vm358, %v558, 0.0
        %v561 = vadd.f32 %v559, %v560
        %562 = vadd.xlane.f32.xlu0 %v561
        %v563 = vpop.xlane.xlu0 %562
        %v564 = vrot.slane %v563, 4
        %v565 = vadd.f32 %v563, %v564
        %v566 = vrot.slane %v565, 2
        %v567 = vadd.f32 %v565, %v566
        %v568 = vrot.slane %v567, 1
        %v569 = vadd.f32 %v567, %v568
        %s570 = vtos %v569
        %s571 = sadd.f32 %s511, %s570
        %v572 = vand.u32 2147483647, %v515
        %v573 = vand.u32 2147483647, %v516
        %v574 = vsub.f32 0.0, %v572
        %v575 = vsub.f32 0.0, %v573
        %v576 = vmul.f32 %v574, 1.442695
        %v577 = vpow.pop %v576
        %v578 = vmul.f32 %v575, 1.442695
        %v579 = vpow.pop %v578
        %v580 = vadd.f32 %v577, 1.0
        %v581 = vlog2.pop %v580
        %v582 = vmul.f32 %v581, 0.6931472
        %v583 = vmul.f32 -0.5, %v577
        %v584 = vadd.f32 %v583, 1.0
        %v585 = vmul.f32 %v584, %v577
        %v586 = vand.u32 2147483647, %v577
        %vm587 = vcmp.lt.f32.partialorder %v586, 0.0004427343
        %v588 = vsel %vm587, %v585, %v582
        %v589 = vadd.f32 %v579, 1.0
        %v590 = vlog2.pop %v589
        %v591 = vmul.f32 %v590, 0.6931472
        %v592 = vmul.f32 -0.5, %v579
        %v593 = vadd.f32 %v592, 1.0
        %v594 = vmul.f32 %v593, %v579
        %v595 = vand.u32 2147483647, %v579
        %vm596 = vcmp.lt.f32.partialorder %v595, 0.0004427343
        %v597 = vsel %vm596, %v594, %v591
        %v598 = vmin.f32 %v515, 0.0
        %v599 = vmin.f32 %v516, 0.0
        %v600 = vsub.f32 %v598, %v588
        %v601 = vsub.f32 %v599, %v597
        %v602 = vsub.f32 %v600, %v515
        %v603 = vsub.f32 %v601, %v516
        %v604 = vmul.f32 %v485, %v600
        %v605 = vmul.f32 %v485, %v601
        %v606 = vmul.f32 %v604, %v356
        %v607 = vmul.f32 %v605, %v357
        %v608 = vmul.f32 %v490, %v602
        %v609 = vmul.f32 %v490, %v603
        %v610 = vmul.f32 %v608, %v493
        %v611 = vmul.f32 %v609, %v494
        %v612 = vsub.f32 %v606, %v610
        %v613 = vsub.f32 %v607, %v611
        %v614 = vsel %vm358, %v612, 0.0
        %v615 = vsel %vm358, %v613, 0.0
        %v616 = vadd.f32 %v614, %v615
        %617 = vadd.xlane.f32.xlu0 %v616
        %v618 = vpop.xlane.xlu0 %617
        %v619 = vrot.slane %v618, 4
        %v620 = vadd.f32 %v618, %v619
        %v621 = vrot.slane %v620, 2
        %v622 = vadd.f32 %v620, %v621
        %v623 = vrot.slane %v622, 1
        %v624 = vadd.f32 %v622, %v623
        %s625 = vtos %v624
        %s626 = sadd.f32 %s571, %s625
        %s627 = sld [smem:[#allocation2]]
        %s628 = sadd.f32 %s627, %s626
        %s629 = scalar_lea.smem [#allocation2], 0
        %630 = sst [smem:[%s629]] %s628
        %p631 = scmp.eq.s32.totalorder %s21, 1
        // Predicated region
        $region49: #{tpu_custom_call.1} parent=31 // pred_check
          %p632 = pneg %p631
        $region50: #{tpu_custom_call.1} parent=31 // pred_check_branch
          %634 = sbr.rel (%p632) target = $region52
        $region51: #{tpu_custom_call.1} parent=31 // pred_region
          %s635 = sld [smem:[#allocation2]]
          %s636 = smul.f32 %s635, 0.0009765625
          %s637 = scalar_lea.smem [#allocation9], 0
          %638 = sst [smem:[%s637]] %s636
        $region52: #{tpu_custom_call.1} parent=31 // pred_fallthru
          _
        // Predicated region
        $region53: #{tpu_custom_call.1} parent=31 // pred_check
          %p639 = pneg %p112
        $region54: #{tpu_custom_call.1} parent=31 // pred_check_branch
          %641 = sbr.rel (%p639) target = $region56
        $region55: #{tpu_custom_call.1} parent=31 // pred_region
          %643 = vsyncadd [#allocation5], 0
          %s645 = sshll.u32 %s3, 4
          %s646 = int_to_ptr.hbm [resolvable:$true] %s645
          %648 = dma.smem_to_hbm [#allocation9], 16, %s646, [#allocation5]
        $region56: #{tpu_custom_call.1} parent=31 // pred_fallthru
          _
        // Predicated region
        $region57: #{tpu_custom_call.1} parent=31 // pred_check
          %p649 = pneg %p112
        $region58: #{tpu_custom_call.1} parent=31 // pred_check_branch
          %651 = sbr.rel (%p649) target = $region60
        $region59: #{tpu_custom_call.1} parent=31 // pred_region
          %653 = dma.done [#allocation5], 16
        $region60: #{tpu_custom_call.1} parent=31 // pred_fallthru
          _
        %654 = sfence
      $region32: #{tpu_custom_call.1} parent=5 // pred_fallthru
        _
      %p655 = scmp.le.s32.totalorder 2, %s16
      // Predicated region
      $region61: #{tpu_custom_call.1} parent=5 // pred_check
        %p656 = pneg %p655
      $region62: #{tpu_custom_call.1} parent=5 // pred_check_branch
        %658 = sbr.rel (%p656) target = $region64
      $region63: #{tpu_custom_call.1} parent=5 // pred_region
        %s659 = ssub.s32 %s16, 2
      $region64: #{tpu_custom_call.1} parent=5 // pred_fallthru
        _
    $region6: #{tpu_custom_call.1} parent=1 // loop_footer
      %s20 = sadd.s32 1, %s16
    $region7: #{tpu_custom_call.1} parent=1 // loop_footer_branch
      %15 = sbr.rel target = $region3
    $region8: #{tpu_custom_call.1} parent=1 // loop_exit
      _
    %660 = vsyncpa [#allocation4], 1
    %s661 = scalar_lea.sflag [#allocation4], 1
    %662 = vsyncpa %s661, 1
    %663 = vsyncpa [#allocation7], 1
    %s664 = scalar_lea.sflag [#allocation7], 1
    %665 = vsyncpa %s664, 1
    %666 = vsyncpa [#allocation5], 1
    %s667 = scalar_lea.sflag [#allocation5], 1
    %668 = vsyncpa %s667, 1

</llo_original>
